<compile_context>
chip_gen: v6e
topology: v6e:2x2x1
jax: 0.10.0
libtpu: 0.0.40
codegen_flags: <defaults>
</compile_context>

<pallas_src>
import jax
import jax.numpy as jnp
import numpy as np
from jax.experimental import pallas as pl
from jax.experimental.pallas import tpu as pltpu


def _elu(x):
    # F.elu with alpha=1.  exp(x)-1 matches torch's expm1 formulation to within
    # float32 rounding for the negative branch.
    return jnp.where(x > 0.0, x, jnp.exp(x) - 1.0)


def _policy_kernel(x_ref, w1_ref, b1_ref, w2_ref, b2_ref, w3_ref, b3_ref, o_ref):
    # x_ref: (TB, L)   w1: (L, H)  b1: (1, H)
    #                  w2: (H, H)  b2: (1, H)
    #                  w3: (H, A)  b3: (1, A)   o_ref: (TB, A)
    x = x_ref[...].astype(jnp.float32)

    h = jnp.dot(x, w1_ref[...].astype(jnp.float32),
                preferred_element_type=jnp.float32)
    h = _elu(h + b1_ref[...].astype(jnp.float32))

    h = jnp.dot(h, w2_ref[...].astype(jnp.float32),
                preferred_element_type=jnp.float32)
    h = _elu(h + b2_ref[...].astype(jnp.float32))

    a = jnp.dot(h, w3_ref[...].astype(jnp.float32),
                preferred_element_type=jnp.float32)
    a = a + b3_ref[...].astype(jnp.float32)

    o_ref[...] = a.astype(o_ref.dtype)


def policy_forward(x, w1, b1, w2, b2, w3, b3, *, block_b=512):
    """Fused Pallas forward for Policy.

    x:  (B, latent_dim)
    w1: (latent_dim, hidden_dim)   b1: (hidden_dim,)
    w2: (hidden_dim, hidden_dim)   b2: (hidden_dim,)
    w3: (hidden_dim, action_dim)   b3: (action_dim,)
    (weights are the transposes of the torch nn.Linear .weight tensors)
    """
    B, L = x.shape
    H = w1.shape[1]
    A = w3.shape[1]

    # Batch tiling: one grid step if the batch is small / not tileable,
    # otherwise block_b-sized tiles (block_b is a multiple of 8).
    if B <= block_b or B % block_b != 0:
        tb = B
    else:
        tb = block_b
    grid = (B // tb,)

    b1r = b1.reshape(1, H)
    b2r = b2.reshape(1, H)
    b3r = b3.reshape(1, A)

    flops = 2 * B * (L * H + H * H + H * A)
    transcendentals = 2 * B * H                      # one exp per ELU element
    bytes_accessed = 4 * (B * L + L * H + H * H + H * A + 2 * H + A + B * A)

    return pl.pallas_call(
        _policy_kernel,
        out_shape=jax.ShapeDtypeStruct((B, A), x.dtype),
        grid_spec=pltpu.PrefetchScalarGridSpec(
            num_scalar_prefetch=0,
            grid=grid,
            in_specs=[
                pl.BlockSpec((tb, L), lambda i: (i, 0)),   # activations: tiled over batch
                pl.BlockSpec((L, H), lambda i: (0, 0)),    # weights: resident across grid
                pl.BlockSpec((1, H), lambda i: (0, 0)),
                pl.BlockSpec((H, H), lambda i: (0, 0)),
                pl.BlockSpec((1, H), lambda i: (0, 0)),
                pl.BlockSpec((H, A), lambda i: (0, 0)),
                pl.BlockSpec((1, A), lambda i: (0, 0)),
            ],
            out_specs=pl.BlockSpec((tb, A), lambda i: (i, 0)),
        ),
        compiler_params=pltpu.CompilerParams(
            dimension_semantics=("parallel",),             # shard batch tiles across TCs (v7x)
        ),
        cost_estimate=pl.CostEstimate(
            flops=flops,
            transcendentals=transcendentals,
            bytes_accessed=bytes_accessed,
        ),
    )(x, w1, b1r, w2, b2r, w3, b3r)


def _reference(x, w1, b1, w2, b2, w3, b3):
    h = _elu(x @ w1 + b1)
    h = _elu(h @ w2 + b2)
    return h @ w3 + b3


if __name__ == "__main__":
    # Small shapes implied by the module: (batch, latent) -> (batch, action)
    BATCH, LATENT, HIDDEN, ACTION = 2, 32, 32, 8

    key = jax.random.PRNGKey(0)
    kx, k1, k2, k3, kb1, kb2, kb3 = jax.random.split(key, 7)

    x = jax.random.normal(kx, (BATCH, LATENT), dtype=jnp.float32)
    # Weights stored as (in, out) = transpose of torch nn.Linear .weight.
    w1 = jax.random.normal(k1, (LATENT, HIDDEN), dtype=jnp.float32) * 0.1
    w2 = jax.random.normal(k2, (HIDDEN, HIDDEN), dtype=jnp.float32) * 0.1
    w3 = jax.random.normal(k3, (HIDDEN, ACTION), dtype=jnp.float32) * 0.1
    b1 = jax.random.normal(kb1, (HIDDEN,), dtype=jnp.float32) * 0.1
    b2 = jax.random.normal(kb2, (HIDDEN,), dtype=jnp.float32) * 0.1
    b3 = jax.random.normal(kb3, (ACTION,), dtype=jnp.float32) * 0.1

    out = policy_forward(x, w1, b1, w2, b2, w3, b3)
    out = jax.block_until_ready(out)

    ref = _reference(x, w1, b1, w2, b2, w3, b3)
    assert out.shape == (BATCH, ACTION)
    np.testing.assert_allclose(np.asarray(out), np.asarray(ref),
                               rtol=1e-5, atol=1e-5)

    print("KERNEL_OK")
</pallas_src>

<mosaic_0001>
module attributes {stable_mosaic.version = 11 : i64} {
  func.func @_policy_kernel(%arg0: i32, %arg1: memref<2x32xf32, #tpu.memory_space<vmem>>, %arg2: memref<32x32xf32, #tpu.memory_space<vmem>>, %arg3: memref<1x32xf32, #tpu.memory_space<vmem>>, %arg4: memref<32x32xf32, #tpu.memory_space<vmem>>, %arg5: memref<1x32xf32, #tpu.memory_space<vmem>>, %arg6: memref<32x8xf32, #tpu.memory_space<vmem>>, %arg7: memref<1x8xf32, #tpu.memory_space<vmem>>, %arg8: memref<2x8xf32, #tpu.memory_space<vmem>>) attributes {dimension_semantics = [#tpu.dimension_semantics<parallel>], iteration_bounds = array<i64: 1>, scalar_prefetch = 0 : i64, scratch_operands = 0 : i64, tpu.core_type = #tpu.core_type<tc>, window_params = [{transform_indices = @transform_0, window_bounds = array<i64: 2, 32>}, {pipeline_mode = #tpu.pipeline_mode<synchronous>, transform_indices = @transform_1, window_bounds = array<i64: 32, 32>}, {pipeline_mode = #tpu.pipeline_mode<synchronous>, transform_indices = @transform_2, window_bounds = array<i64: 1, 32>}, {pipeline_mode = #tpu.pipeline_mode<synchronous>, transform_indices = @transform_3, window_bounds = array<i64: 32, 32>}, {pipeline_mode = #tpu.pipeline_mode<synchronous>, transform_indices = @transform_4, window_bounds = array<i64: 1, 32>}, {pipeline_mode = #tpu.pipeline_mode<synchronous>, transform_indices = @transform_5, window_bounds = array<i64: 32, 8>}, {pipeline_mode = #tpu.pipeline_mode<synchronous>, transform_indices = @transform_6, window_bounds = array<i64: 1, 8>}, {transform_indices = @transform_7, window_bounds = array<i64: 2, 8>}]} {
    %c0 = arith.constant 0 : index
    %c0_0 = arith.constant 0 : index
    %0 = vector.load %arg1[%c0, %c0_0] : memref<2x32xf32, #tpu.memory_space<vmem>>, vector<2x32xf32>
    %c0_1 = arith.constant 0 : index
    %c0_2 = arith.constant 0 : index
    %1 = vector.load %arg2[%c0_1, %c0_2] : memref<32x32xf32, #tpu.memory_space<vmem>>, vector<32x32xf32>
    %cst = arith.constant dense<0.000000e+00> : vector<2x32xf32>
    %2 = tpu.matmul %0, %1, %cst {dimension_numbers = #tpu.dot_dimension_numbers<[1], [0], [0], [1], [0, 0, 1, 1], [], []>} : vector<2x32xf32>, vector<32x32xf32>, vector<2x32xf32> -> vector<2x32xf32>
    %c0_3 = arith.constant 0 : index
    %c0_4 = arith.constant 0 : index
    %3 = vector.load %arg3[%c0_3, %c0_4] : memref<1x32xf32, #tpu.memory_space<vmem>>, vector<1x32xf32>
    %4 = vector.broadcast %3 : vector<1x32xf32> to vector<2x32xf32>
    %5 = arith.addf %2, %4 : vector<2x32xf32>
    %cst_5 = arith.constant 0.000000e+00 : f32
    %6 = vector.broadcast %cst_5 : f32 to vector<2x32xf32>
    %7 = arith.cmpf ogt, %5, %6 : vector<2x32xf32>
    %8 = math.exp %5 : vector<2x32xf32>
    %cst_6 = arith.constant 1.000000e+00 : f32
    %9 = vector.broadcast %cst_6 : f32 to vector<2x32xf32>
    %10 = arith.subf %8, %9 : vector<2x32xf32>
    %11 = arith.select %7, %5, %10 : vector<2x32xi1>, vector<2x32xf32>
    %c0_7 = arith.constant 0 : index
    %c0_8 = arith.constant 0 : index
    %12 = vector.load %arg4[%c0_7, %c0_8] : memref<32x32xf32, #tpu.memory_space<vmem>>, vector<32x32xf32>
    %cst_9 = arith.constant dense<0.000000e+00> : vector<2x32xf32>
    %13 = tpu.matmul %11, %12, %cst_9 {dimension_numbers = #tpu.dot_dimension_numbers<[1], [0], [0], [1], [0, 0, 1, 1], [], []>} : vector<2x32xf32>, vector<32x32xf32>, vector<2x32xf32> -> vector<2x32xf32>
    %c0_10 = arith.constant 0 : index
    %c0_11 = arith.constant 0 : index
    %14 = vector.load %arg5[%c0_10, %c0_11] : memref<1x32xf32, #tpu.memory_space<vmem>>, vector<1x32xf32>
    %15 = vector.broadcast %14 : vector<1x32xf32> to vector<2x32xf32>
    %16 = arith.addf %13, %15 : vector<2x32xf32>
    %cst_12 = arith.constant 0.000000e+00 : f32
    %17 = vector.broadcast %cst_12 : f32 to vector<2x32xf32>
    %18 = arith.cmpf ogt, %16, %17 : vector<2x32xf32>
    %19 = math.exp %16 : vector<2x32xf32>
    %cst_13 = arith.constant 1.000000e+00 : f32
    %20 = vector.broadcast %cst_13 : f32 to vector<2x32xf32>
    %21 = arith.subf %19, %20 : vector<2x32xf32>
    %22 = arith.select %18, %16, %21 : vector<2x32xi1>, vector<2x32xf32>
    %c0_14 = arith.constant 0 : index
    %c0_15 = arith.constant 0 : index
    %23 = vector.load %arg6[%c0_14, %c0_15] : memref<32x8xf32, #tpu.memory_space<vmem>>, vector<32x8xf32>
    %cst_16 = arith.constant dense<0.000000e+00> : vector<2x8xf32>
    %24 = tpu.matmul %22, %23, %cst_16 {dimension_numbers = #tpu.dot_dimension_numbers<[1], [0], [0], [1], [0, 0, 1, 1], [], []>} : vector<2x32xf32>, vector<32x8xf32>, vector<2x8xf32> -> vector<2x8xf32>
    %c0_17 = arith.constant 0 : index
    %c0_18 = arith.constant 0 : index
    %25 = vector.load %arg7[%c0_17, %c0_18] : memref<1x8xf32, #tpu.memory_space<vmem>>, vector<1x8xf32>
    %26 = vector.broadcast %25 : vector<1x8xf32> to vector<2x8xf32>
    %27 = arith.addf %24, %26 : vector<2x8xf32>
    %c0_19 = arith.constant 0 : index
    %c0_20 = arith.constant 0 : index
    %28 = vector.load %arg8[%c0_19, %c0_20] : memref<2x8xf32, #tpu.memory_space<vmem>>, vector<2x8xf32>
    tpu.vector_store %arg8[%c0_19, %c0_20], %27 {strides = array<i32>} : memref<2x8xf32, #tpu.memory_space<vmem>>, vector<2x8xf32>,
    return
  }
  func.func @transform_0(%arg0: i32) -> (i32, i32) {
    %c0_i32 = arith.constant 0 : i32
    %c0_i32_0 = arith.constant 0 : i32
    return %arg0, %c0_i32 : i32, i32
  }
  func.func @transform_1(%arg0: i32) -> (i32, i32) {
    %c0_i32 = arith.constant 0 : i32
    %c0_i32_0 = arith.constant 0 : i32
    %c0_i32_1 = arith.constant 0 : i32
    return %c0_i32, %c0_i32_0 : i32, i32
  }
  func.func @transform_2(%arg0: i32) -> (i32, i32) {
    %c0_i32 = arith.constant 0 : i32
    %c0_i32_0 = arith.constant 0 : i32
    %c0_i32_1 = arith.constant 0 : i32
    return %c0_i32, %c0_i32_0 : i32, i32
  }
  func.func @transform_3(%arg0: i32) -> (i32, i32) {
    %c0_i32 = arith.constant 0 : i32
    %c0_i32_0 = arith.constant 0 : i32
    %c0_i32_1 = arith.constant 0 : i32
    return %c0_i32, %c0_i32_0 : i32, i32
  }
  func.func @transform_4(%arg0: i32) -> (i32, i32) {
    %c0_i32 = arith.constant 0 : i32
    %c0_i32_0 = arith.constant 0 : i32
    %c0_i32_1 = arith.constant 0 : i32
    return %c0_i32, %c0_i32_0 : i32, i32
  }
  func.func @transform_5(%arg0: i32) -> (i32, i32) {
    %c0_i32 = arith.constant 0 : i32
    %c0_i32_0 = arith.constant 0 : i32
    %c0_i32_1 = arith.constant 0 : i32
    return %c0_i32, %c0_i32_0 : i32, i32
  }
  func.func @transform_6(%arg0: i32) -> (i32, i32) {
    %c0_i32 = arith.constant 0 : i32
    %c0_i32_0 = arith.constant 0 : i32
    %c0_i32_1 = arith.constant 0 : i32
    return %c0_i32, %c0_i32_0 : i32, i32
  }
  func.func @transform_7(%arg0: i32) -> (i32, i32) {
    %c0_i32 = arith.constant 0 : i32
    %c0_i32_0 = arith.constant 0 : i32
    return %arg0, %c0_i32 : i32, i32
  }
}

</mosaic_0001>

<llo_original>
// kernel: tpu_custom_call.1
$region0: #{tpu_custom_call.1}
  #allocation0 [shape = 'u32[]', space=smem, size = 0x4, offset = 0x4, fixed_abs, tag = 'smem constant byte address 0x4 - core index']
  #allocation1 [shape = 'u32[144,128]{1,0:T(1,128)}', space=vmem, size = 0x12000, scoped, tag = 'internal scratch']
  %s0 = inlined_call_operand.vmem [shape: f32[2,32], index: 0, kind: input, shape index: {}]
  %s1 = inlined_call_operand.vmem [shape: f32[32,32], index: 1, kind: input, shape index: {}]
  %s2 = inlined_call_operand.vmem [shape: f32[1,32], index: 2, kind: input, shape index: {}]
  %s3 = inlined_call_operand.hbm [shape: f32[32,32], index: 3, kind: input, shape index: {}]
  %s4 = inlined_call_operand.vmem [shape: f32[1,32], index: 4, kind: input, shape index: {}]
  %s5 = inlined_call_operand.vmem [shape: f32[32,8], index: 5, kind: input, shape index: {}]
  %s6 = inlined_call_operand.vmem [shape: f32[1,8], index: 6, kind: input, shape index: {}]
  %s7 = inlined_call_operand.hbm [shape: f32[2,8], index: 7, kind: output, shape index: {}]
  %s8 = sld [smem:[#allocation0]]
  $region42: #{tpu_custom_call.1} parent=0
    _
  %s10 = ssub.s32 1, %s8
  %s11 = scalar_select 0, %s10, %s8
  $region1: #{tpu_custom_call.1} parent=0
    #allocation2 [shape = 'u8[16384]{0}', space=vmem, size = 0x4000, scoped, tag = 'input window, operand 3, single buffered']
    #allocation3 [shape = 's32[1]{0}', space=sflag, size = 0x4, scoped, tag = 'scoped memory for tpu_custom_call.1']
    #allocation4 [shape = 's32[1]{0}', space=sflag, size = 0x4, scoped, tag = 'scoped memory for tpu_custom_call.1']
    #allocation5 [shape = 'u8[1024]{0}', space=vmem, size = 0x400, scoped, tag = 'output window, operand 0, single buffered']
    %12 = vsyncpa [#allocation3], 0
    %13 = vsyncpa [#allocation4], 0
    // Predicated region
    $region2: #{tpu_custom_call.1} parent=1 // pred_check
      _
    $region3: #{tpu_custom_call.1} parent=1 // pred_check_branch
      %15 = sbr.rel (0) target = $region5
    $region4: #{tpu_custom_call.1} parent=1 // pred_region
      _
    $region5: #{tpu_custom_call.1} parent=1 // pred_fallthru
      _
    // Predicated region
    $region6: #{tpu_custom_call.1} parent=1 // pred_check
      _
    $region7: #{tpu_custom_call.1} parent=1 // pred_check_branch
      %17 = sbr.rel (0) target = $region9
    $region8: #{tpu_custom_call.1} parent=1 // pred_region
      _
    $region9: #{tpu_custom_call.1} parent=1 // pred_fallthru
      _
    // Predicated region
    $region10: #{tpu_custom_call.1} parent=1 // pred_check
      _
    $region11: #{tpu_custom_call.1} parent=1 // pred_check_branch
      %19 = sbr.rel (0) target = $region13
    $region12: #{tpu_custom_call.1} parent=1 // pred_region
      _
    $region13: #{tpu_custom_call.1} parent=1 // pred_fallthru
      _
    // Predicated region
    $region14: #{tpu_custom_call.1} parent=1 // pred_check
      _
    $region15: #{tpu_custom_call.1} parent=1 // pred_check_branch
      %21 = sbr.rel (0) target = $region17
    $region16: #{tpu_custom_call.1} parent=1 // pred_region
      %s23 = ssub.s32 512, 512
      %24 = vsyncadd [#allocation3], %s23
      %s25 = sshll.u32 [#allocation2], 4
      %s26 = int_to_ptr.vmem [resolvable:$true] %s25
      %31 = dma.hbm_to_vmem [thread:$0]  %s3, 512, %s26, [#allocation3], 128, 128, 8
    $region17: #{tpu_custom_call.1} parent=1 // pred_fallthru
      _
    // Predicated region
    $region18: #{tpu_custom_call.1} parent=1 // pred_check
      _
    $region19: #{tpu_custom_call.1} parent=1 // pred_check_branch
      %33 = sbr.rel (0) target = $region21
    $region20: #{tpu_custom_call.1} parent=1 // pred_region
      _
    $region21: #{tpu_custom_call.1} parent=1 // pred_fallthru
      _
    // Predicated region
    $region22: #{tpu_custom_call.1} parent=1 // pred_check
      _
    $region23: #{tpu_custom_call.1} parent=1 // pred_check_branch
      %35 = sbr.rel (0) target = $region25
    $region24: #{tpu_custom_call.1} parent=1 // pred_region
      _
    $region25: #{tpu_custom_call.1} parent=1 // pred_fallthru
      _
    // Predicated region
    $region26: #{tpu_custom_call.1} parent=1 // pred_check
      _
    $region27: #{tpu_custom_call.1} parent=1 // pred_check_branch
      %37 = sbr.rel (0) target = $region29
    $region28: #{tpu_custom_call.1} parent=1 // pred_region
      _
    $region29: #{tpu_custom_call.1} parent=1 // pred_fallthru
      _
    // Predicated region
    $region30: #{tpu_custom_call.1} parent=1 // pred_check
      _
    $region31: #{tpu_custom_call.1} parent=1 // pred_check_branch
      %39 = sbr.rel (0) target = $region33
    $region32: #{tpu_custom_call.1} parent=1 // pred_region
      %40 = dma.done [#allocation3], 512
    $region33: #{tpu_custom_call.1} parent=1 // pred_fallthru
      _
    %v41 = vld [vmem:[%s0] sm:$0x3]
    %v42 = vld [vmem:[%s1] sm:$0xff]
    %v43 = vld [vmem:[%s1 + $0x8] sm:$0xff]
    %v44 = vld [vmem:[%s1 + $0x10] sm:$0xff]
    %v45 = vld [vmem:[%s1 + $0x18] sm:$0xff]
    %v46 = vld [vmem:[%s2] sm:$0x1]
    %v48 = vlaneseq
    %v49 = vshrl.u32 %v48, 7
    %v50 = vsub.s32 0, %v49
    %v51 = vrot.slane %v46, %v50
    %vm53 = vcmask 261120
    %v55 = vsel %vm53, %v41, 0
    %57 = vmatprep.subr.mxu0 0.0
    %58 = vmatpush1.msra.mxu0 0.0
    %59 = vmatprep.subr.mxu0 0.0
    %60 = vmatpush1.msra.mxu0 0.0
    %61 = vmatprep.subr.mxu0 0.0
    %62 = vmatpush1.msra.mxu0 0.0
    %63 = vmatprep.subr.mxu0 0.0
    %64 = vmatpush1.msra.mxu0 0.0
    %65 = vmatprep.subr.mxu0 0.0
    %66 = vmatpush1.msra.mxu0 0.0
    %67 = vmatprep.subr.mxu0 0.0
    %68 = vmatpush1.msra.mxu0 0.0
    %69 = vmatprep.subr.mxu0 0.0
    %70 = vmatpush1.msra.mxu0 0.0
    %71 = vmatprep.subr.mxu0 0.0
    %72 = vmatpush1.msra.mxu0 0.0
    %73 = vmatprep.subr.mxu0 0.0
    %74 = vmatpush1.msra.mxu0 0.0
    %75 = vmatprep.subr.mxu0 0.0
    %76 = vmatpush1.msra.mxu0 0.0
    %77 = vmatprep.subr.mxu0 0.0
    %78 = vmatpush1.msra.mxu0 0.0
    %79 = vmatprep.subr.mxu0 0.0
    %80 = vmatpush1.msra.mxu0 0.0
    %81 = vmatprep.subr.mxu0 0.0
    %82 = vmatpush1.msra.mxu0 %v45
    %83 = vmatprep.subr.mxu0 0.0
    %84 = vmatpush1.msra.mxu0 %v44
    %85 = vmatprep.subr.mxu0 0.0
    %86 = vmatpush1.msra.mxu0 %v43
    %87 = vmatprep.subr.mxu0 0.0
    %88 = vmatpush1.msra.mxu0 %v42
    %89 = vmatprep.subr.mxu0 0.0
    %90 = vmatpush2.msra.mxu0 0.0
    %91 = vmatprep.subr.mxu0 0.0
    %92 = vmatpush2.msra.mxu0 0.0
    %93 = vmatprep.subr.mxu0 0.0
    %94 = vmatpush2.msra.mxu0 0.0
    %95 = vmatprep.subr.mxu0 0.0
    %96 = vmatpush2.msra.mxu0 0.0
    %97 = vmatprep.subr.mxu0 0.0
    %98 = vmatpush2.msra.mxu0 0.0
    %99 = vmatprep.subr.mxu0 0.0
    %100 = vmatpush2.msra.mxu0 0.0
    %101 = vmatprep.subr.mxu0 0.0
    %102 = vmatpush2.msra.mxu0 0.0
    %103 = vmatprep.subr.mxu0 0.0
    %104 = vmatpush2.msra.mxu0 0.0
    %105 = vmatprep.subr.mxu0 0.0
    %106 = vmatpush2.msra.mxu0 0.0
    %107 = vmatprep.subr.mxu0 0.0
    %108 = vmatpush2.msra.mxu0 0.0
    %109 = vmatprep.subr.mxu0 0.0
    %110 = vmatpush2.msra.mxu0 0.0
    %111 = vmatprep.subr.mxu0 0.0
    %112 = vmatpush2.msra.mxu0 0.0
    %113 = vmatprep.subr.mxu0 0.0
    %114 = vmatpush2.msra.mxu0 0.0
    %115 = vmatprep.subr.mxu0 0.0
    %116 = vmatpush2.msra.mxu0 0.0
    %117 = vmatprep.subr.mxu0 0.0
    %118 = vmatpush2.msra.mxu0 0.0
    %119 = vmatprep.subr.mxu0 0.0
    %120 = vmatpush2.msra.mxu0 0.0
    %121 = vmatprep.mubr.f32.mxu0 0.0
    %122 = vmatmul.mubr.f32.gmra.mxu0 %v55
    %v123 = vpop.f32.mrf.mxu0
    %v124 = vadd.f32 %v51, %v123
    %v125 = vpop.f32.mrf.mxu0
    %126 = vdwg.mxu0
    %vm127 = vcmp.gt.f32.partialorder %v124, 0.0
    %v128 = vmul.f32 %v124, 1.442695
    %v129 = vpow.pop %v128
    %v130 = vsub.f32 %v129, 1.0
    %v131 = vsel %vm127, %v124, %v130
    %v132 = vld [vmem:[#allocation2] sm:$0xff]
    %v133 = vld [vmem:[#allocation2 + $0x8] sm:$0xff]
    %v134 = vld [vmem:[#allocation2 + $0x10] sm:$0xff]
    %v135 = vld [vmem:[#allocation2 + $0x18] sm:$0xff]
    %v136 = vld [vmem:[%s4] sm:$0x1]
    %v138 = vlaneseq
    %v139 = vshrl.u32 %v138, 7
    %v140 = vsub.s32 0, %v139
    %v141 = vrot.slane %v136, %v140
    %v144 = vsel %vm53, %v131, 0
    %146 = vmatprep.subr.mxu0 0.0
    %147 = vmatpush1.msra.mxu0 0.0
    %148 = vmatprep.subr.mxu0 0.0
    %149 = vmatpush1.msra.mxu0 0.0
    %150 = vmatprep.subr.mxu0 0.0
    %151 = vmatpush1.msra.mxu0 0.0
    %152 = vmatprep.subr.mxu0 0.0
    %153 = vmatpush1.msra.mxu0 0.0
    %154 = vmatprep.subr.mxu0 0.0
    %155 = vmatpush1.msra.mxu0 0.0
    %156 = vmatprep.subr.mxu0 0.0
    %157 = vmatpush1.msra.mxu0 0.0
    %158 = vmatprep.subr.mxu0 0.0
    %159 = vmatpush1.msra.mxu0 0.0
    %160 = vmatprep.subr.mxu0 0.0
    %161 = vmatpush1.msra.mxu0 0.0
    %162 = vmatprep.subr.mxu0 0.0
    %163 = vmatpush1.msra.mxu0 0.0
    %164 = vmatprep.subr.mxu0 0.0
    %165 = vmatpush1.msra.mxu0 0.0
    %166 = vmatprep.subr.mxu0 0.0
    %167 = vmatpush1.msra.mxu0 0.0
    %168 = vmatprep.subr.mxu0 0.0
    %169 = vmatpush1.msra.mxu0 0.0
    %170 = vmatprep.subr.mxu0 0.0
    %171 = vmatpush1.msra.mxu0 %v135
    %172 = vmatprep.subr.mxu0 0.0
    %173 = vmatpush1.msra.mxu0 %v134
    %174 = vmatprep.subr.mxu0 0.0
    %175 = vmatpush1.msra.mxu0 %v133
    %176 = vmatprep.subr.mxu0 0.0
    %177 = vmatpush1.msra.mxu0 %v132
    %178 = vmatprep.subr.mxu0 0.0
    %179 = vmatpush2.msra.mxu0 0.0
    %180 = vmatprep.subr.mxu0 0.0
    %181 = vmatpush2.msra.mxu0 0.0
    %182 = vmatprep.subr.mxu0 0.0
    %183 = vmatpush2.msra.mxu0 0.0
    %184 = vmatprep.subr.mxu0 0.0
    %185 = vmatpush2.msra.mxu0 0.0
    %186 = vmatprep.subr.mxu0 0.0
    %187 = vmatpush2.msra.mxu0 0.0
    %188 = vmatprep.subr.mxu0 0.0
    %189 = vmatpush2.msra.mxu0 0.0
    %190 = vmatprep.subr.mxu0 0.0
    %191 = vmatpush2.msra.mxu0 0.0
    %192 = vmatprep.subr.mxu0 0.0
    %193 = vmatpush2.msra.mxu0 0.0
    %194 = vmatprep.subr.mxu0 0.0
    %195 = vmatpush2.msra.mxu0 0.0
    %196 = vmatprep.subr.mxu0 0.0
    %197 = vmatpush2.msra.mxu0 0.0
    %198 = vmatprep.subr.mxu0 0.0
    %199 = vmatpush2.msra.mxu0 0.0
    %200 = vmatprep.subr.mxu0 0.0
    %201 = vmatpush2.msra.mxu0 0.0
    %202 = vmatprep.subr.mxu0 0.0
    %203 = vmatpush2.msra.mxu0 0.0
    %204 = vmatprep.subr.mxu0 0.0
    %205 = vmatpush2.msra.mxu0 0.0
    %206 = vmatprep.subr.mxu0 0.0
    %207 = vmatpush2.msra.mxu0 0.0
    %208 = vmatprep.subr.mxu0 0.0
    %209 = vmatpush2.msra.mxu0 0.0
    %210 = vmatprep.mubr.f32.mxu0 0.0
    %211 = vmatmul.mubr.f32.gmra.mxu0 %v144
    %v212 = vpop.f32.mrf.mxu0
    %v213 = vadd.f32 %v141, %v212
    %v214 = vpop.f32.mrf.mxu0
    %215 = vdwg.mxu0
    %vm216 = vcmp.gt.f32.partialorder %v213, 0.0
    %v217 = vmul.f32 %v213, 1.442695
    %v218 = vpow.pop %v217
    %v219 = vsub.f32 %v218, 1.0
    %v220 = vsel %vm216, %v213, %v219
    %v221 = vld [vmem:[%s5] sm:$0xff]
    %v222 = vld [vmem:[%s5 + $0x8] sm:$0xff]
    %v223 = vld [vmem:[%s5 + $0x10] sm:$0xff]
    %v224 = vld [vmem:[%s5 + $0x18] sm:$0xff]
    %v225 = vld [vmem:[%s6] sm:$0x1]
    %v227 = vlaneseq
    %v228 = vshrl.u32 %v227, 7
    %v229 = vsub.s32 0, %v228
    %v230 = vrot.slane %v225, %v229
    %v233 = vsel %vm53, %v220, 0
    %235 = vmatprep.subr.mxu0 0.0
    %236 = vmatpush1.msra.mxu0 0.0
    %237 = vmatprep.subr.mxu0 0.0
    %238 = vmatpush1.msra.mxu0 0.0
    %239 = vmatprep.subr.mxu0 0.0
    %240 = vmatpush1.msra.mxu0 0.0
    %241 = vmatprep.subr.mxu0 0.0
    %242 = vmatpush1.msra.mxu0 0.0
    %243 = vmatprep.subr.mxu0 0.0
    %244 = vmatpush1.msra.mxu0 0.0
    %245 = vmatprep.subr.mxu0 0.0
    %246 = vmatpush1.msra.mxu0 0.0
    %247 = vmatprep.subr.mxu0 0.0
    %248 = vmatpush1.msra.mxu0 0.0
    %249 = vmatprep.subr.mxu0 0.0
    %250 = vmatpush1.msra.mxu0 0.0
    %251 = vmatprep.subr.mxu0 0.0
    %252 = vmatpush1.msra.mxu0 0.0
    %253 = vmatprep.subr.mxu0 0.0
    %254 = vmatpush1.msra.mxu0 0.0
    %255 = vmatprep.subr.mxu0 0.0
    %256 = vmatpush1.msra.mxu0 0.0
    %257 = vmatprep.subr.mxu0 0.0
    %258 = vmatpush1.msra.mxu0 0.0
    %259 = vmatprep.subr.mxu0 0.0
    %260 = vmatpush1.msra.mxu0 %v224
    %261 = vmatprep.subr.mxu0 0.0
    %262 = vmatpush1.msra.mxu0 %v223
    %263 = vmatprep.subr.mxu0 0.0
    %264 = vmatpush1.msra.mxu0 %v222
    %265 = vmatprep.subr.mxu0 0.0
    %266 = vmatpush1.msra.mxu0 %v221
    %267 = vmatprep.subr.mxu0 0.0
    %268 = vmatpush2.msra.mxu0 0.0
    %269 = vmatprep.subr.mxu0 0.0
    %270 = vmatpush2.msra.mxu0 0.0
    %271 = vmatprep.subr.mxu0 0.0
    %272 = vmatpush2.msra.mxu0 0.0
    %273 = vmatprep.subr.mxu0 0.0
    %274 = vmatpush2.msra.mxu0 0.0
    %275 = vmatprep.subr.mxu0 0.0
    %276 = vmatpush2.msra.mxu0 0.0
    %277 = vmatprep.subr.mxu0 0.0
    %278 = vmatpush2.msra.mxu0 0.0
    %279 = vmatprep.subr.mxu0 0.0
    %280 = vmatpush2.msra.mxu0 0.0
    %281 = vmatprep.subr.mxu0 0.0
    %282 = vmatpush2.msra.mxu0 0.0
    %283 = vmatprep.subr.mxu0 0.0
    %284 = vmatpush2.msra.mxu0 0.0
    %285 = vmatprep.subr.mxu0 0.0
    %286 = vmatpush2.msra.mxu0 0.0
    %287 = vmatprep.subr.mxu0 0.0
    %288 = vmatpush2.msra.mxu0 0.0
    %289 = vmatprep.subr.mxu0 0.0
    %290 = vmatpush2.msra.mxu0 0.0
    %291 = vmatprep.subr.mxu0 0.0
    %292 = vmatpush2.msra.mxu0 0.0
    %293 = vmatprep.subr.mxu0 0.0
    %294 = vmatpush2.msra.mxu0 0.0
    %295 = vmatprep.subr.mxu0 0.0
    %296 = vmatpush2.msra.mxu0 0.0
    %297 = vmatprep.subr.mxu0 0.0
    %298 = vmatpush2.msra.mxu0 0.0
    %299 = vmatprep.mubr.f32.mxu0 0.0
    %300 = vmatmul.mubr.f32.gmra.mxu0 %v233
    %v301 = vpop.f32.mrf.mxu0
    %v302 = vadd.f32 %v230, %v301
    %v303 = vpop.f32.mrf.mxu0
    %304 = vdwg.mxu0
    %vm305 = vcmask 58368
    %306 = vst.msk [vmem:[#allocation5] sm:$0x3] %vm305, %v302
    // Predicated region
    $region34: #{tpu_custom_call.1} parent=1 // pred_check
      _
    $region35: #{tpu_custom_call.1} parent=1 // pred_check_branch
      %308 = sbr.rel (0) target = $region37
    $region36: #{tpu_custom_call.1} parent=1 // pred_region
      %s310 = ssub.s32 32, 32
      %311 = vsyncadd [#allocation4], %s310
      %s313 = sshll.u32 [#allocation5], 4
      %s314 = int_to_ptr.vmem [resolvable:$true] %s313
      %316 = dma.vmem_to_hbm [thread:$0]  %s314, 32, %s7, [#allocation4]
    $region37: #{tpu_custom_call.1} parent=1 // pred_fallthru
      _
    // Predicated region
    $region38: #{tpu_custom_call.1} parent=1 // pred_check
      _
    $region39: #{tpu_custom_call.1} parent=1 // pred_check_branch
      %318 = sbr.rel (0) target = $region41
    $region40: #{tpu_custom_call.1} parent=1 // pred_region
      %319 = dma.done [#allocation4], 32
    $region41: #{tpu_custom_call.1} parent=1 // pred_fallthru
      _
    %320 = vsyncpa [#allocation3], 1
    %321 = vsyncpa [#allocation4], 1

</llo_original>
